<compile_context>
chip_gen: v7x
topology: tpu7x:2x2x1
jax: 0.10.0
libtpu: 0.0.40
codegen_flags: <defaults>
</compile_context>

<pallas_src>
import functools

import jax
import jax.numpy as jnp
from jax.experimental import pallas as pl
from jax.experimental.pallas import tpu as pltpu

_LANE = 128
_SUB = 8
_TILE_BYTES = 4 * 1024 * 1024   # per-input, per-grid-step DMA size
_SLAB_BYTES = 256 * 1024        # per-input in-kernel working slab
_SHARD_MIN_TILES = 8            # need >= this many full tiles to use 2 shards
_VMEM_LIMIT = 32 * 1024 * 1024


def _round_up(a, b):
    return -(-a // b) * b


def _round_down(a, b):
    return (a // b) * b


def _rmse_partial_kernel(x_ref, y_ref, acc_ref, *, slab_rows):
    """Accumulate sum((x-y)^2) of one (tile_rows, 128) tile into an (8, 128) block."""
    k = pl.program_id(1)   # reduction axis (innermost, "arbitrary")

    @pl.when(k == 0)
    def _():
        acc_ref[...] = jnp.zeros_like(acc_ref)

    tile_rows = x_ref.shape[0]

    def slab_body(s, acc):
        r = pl.multiple_of(s * slab_rows, slab_rows)
        # Cast in-kernel so sub-32-bit inputs travel through HBM at native width.
        xs = x_ref[pl.ds(r, slab_rows), :].astype(jnp.float32)
        ys = y_ref[pl.ds(r, slab_rows), :].astype(jnp.float32)
        d = xs - ys
        # Fold the slab down to a single (8, 128) vreg partial on the VPU
        # (layout-free reshape: slab_rows is a multiple of 8).
        return acc + (d * d).reshape(-1, _SUB, _LANE).sum(axis=0)

    acc = jax.lax.fori_loop(0, tile_rows // slab_rows, slab_body,
                            jnp.zeros((_SUB, _LANE), jnp.float32), unroll=True)
    acc_ref[...] += acc


def rmse_loss(x, y):
    """Pallas equivalent of RMSELoss.forward: sqrt(mean((ravel(x)-ravel(y))**2))."""
    xf = jnp.ravel(x)
    yf = jnp.ravel(y)
    n = xf.shape[0]
    assert yf.shape[0] == n, "MSELoss requires matching element counts"

    # Dtype-aware tiling: keep per-step DMAs at ~4 MiB per input and round row
    # counts to the packed-sublane multiple (8 f32 / 16 bf16 / 32 int8).
    item_x = jnp.dtype(xf.dtype).itemsize
    item_y = jnp.dtype(yf.dtype).itemsize
    itemsize = max(item_x, item_y)
    sub_mult = _SUB * max(max(1, 4 // item_x), max(1, 4 // item_y))
    max_tile_rows = _round_down(_TILE_BYTES // (_LANE * itemsize), sub_mult)
    slab_default = _round_down(_SLAB_BYTES // (_LANE * itemsize), sub_mult)

    # Pad only when unavoidable: ragged (n % 128 != 0) or tiny inputs. Padded
    # entries are zero in BOTH operands -> contribute 0 to the squared-diff
    # sum; the mean divides by the true n.
    # TODO(synk): the ragged case still copies both arrays once; a manual 1-D
    # DMA path (memory_space=pl.ANY) could remove that copy too.
    min_elems = sub_mult * _LANE
    if n % _LANE != 0 or n < min_elems:
        padded_n = max(_round_up(n, _LANE), min_elems)
        xf = jnp.pad(xf, (0, padded_n - n))
        yf = jnp.pad(yf, (0, padded_n - n))
    else:
        padded_n = n

    rows = padded_n // _LANE
    x2 = xf.reshape(rows, _LANE)   # free: contiguous reshape, no data movement
    y2 = yf.reshape(rows, _LANE)

    # Tile sizing: 4 MiB tiles for large inputs, clamped (to a sublane/slab
    # multiple <= rows) for small ones so the block never exceeds the array.
    tile_rows = max_tile_rows if rows >= max_tile_rows else _round_down(rows, sub_mult)
    if tile_rows >= slab_default:
        tile_rows = _round_down(tile_rows, slab_default)
        slab_rows = slab_default
    else:
        slab_rows = tile_rows

    num_tiles = rows // tile_rows
    # Shard axis only when there is plenty of work; exact tile coverage so the
    # kernel never sees a partial block and never needs masking.
    # TODO(synk): verify on a v7x profile that "parallel" engages both
    # TensorCores; if not, switch to pltpu.CORE_PARALLEL / pl.core_map.
    num_shards = 2 if num_tiles >= _SHARD_MIN_TILES else 1
    num_tiles = _round_down(num_tiles, num_shards)
    tiles_per_shard = num_tiles // num_shards
    bulk_rows = num_tiles * tile_rows          # rows handled by the Pallas kernel

    def in_map(i, k):
        return (i * tiles_per_shard + k, 0)

    partials = pl.pallas_call(
        functools.partial(_rmse_partial_kernel, slab_rows=slab_rows),
        out_shape=jax.ShapeDtypeStruct((num_shards * _SUB, _LANE), jnp.float32),
        grid_spec=pltpu.PrefetchScalarGridSpec(
            num_scalar_prefetch=0,
            grid=(num_shards, tiles_per_shard),
            in_specs=[
                pl.BlockSpec((tile_rows, _LANE), in_map),
                pl.BlockSpec((tile_rows, _LANE), in_map),
            ],
            # One resident (8, 128) partial-sum block per shard (accumulator
            # pattern: same block index across the reduction axis).
            out_specs=pl.BlockSpec((_SUB, _LANE), lambda i, k: (i, 0)),
        ),
        compiler_params=pltpu.CompilerParams(
            dimension_semantics=("parallel", "arbitrary"),
            vmem_limit_bytes=_VMEM_LIMIT,
        ),
    )(x2, y2)

    bulk_sum = jnp.sum(partials, dtype=jnp.float32)

    # Sub-tile remainder (< 2 tiles worth of rows): tiny fused XLA reduce over
    # the tail only — no full-array copy. Empty slice when coverage is exact.
    tail_x = xf[bulk_rows * _LANE:].astype(jnp.float32)
    tail_y = yf[bulk_rows * _LANE:].astype(jnp.float32)
    tail_sum = jnp.sum((tail_x - tail_y) ** 2, dtype=jnp.float32)

    # Mean over the TRUE element count, then sqrt.
    return jnp.sqrt((bulk_sum + tail_sum) / jnp.float32(n))


if __name__ == "__main__":
    key = jax.random.PRNGKey(0)
    kx, ky, kz, kw = jax.random.split(key, 4)

    # Primary check: f32, shapes consistent with the module's usage.
    x = jax.random.normal(kx, (2, 4, 16, 16), dtype=jnp.float32)
    y = jax.random.normal(ky, (2, 4, 16, 16), dtype=jnp.float32)
    loss = rmse_loss(x, y)
    jax.block_until_ready(loss)
    ref = jnp.sqrt(jnp.mean((x.ravel() - y.ravel()) ** 2))
    assert jnp.allclose(loss, ref, rtol=1e-5, atol=1e-6), (loss, ref)

    # Ragged-size check (exercises the minimal zero-pad path).
    xr = jax.random.normal(kz, (3, 5, 7), dtype=jnp.float32)
    yr = jax.random.normal(kw, (3, 5, 7), dtype=jnp.float32)
    loss_r = rmse_loss(xr, yr)
    jax.block_until_ready(loss_r)
    ref_r = jnp.sqrt(jnp.mean((xr.ravel() - yr.ravel()) ** 2))
    assert jnp.allclose(loss_r, ref_r, rtol=1e-5, atol=1e-6), (loss_r, ref_r)

    # 128-aligned but not tile-aligned (exercises Pallas-bulk + XLA-tail split,
    # i.e. the no-pad path for sizes that don't divide into whole tiles).
    xs = jax.random.normal(kx, (9, 128), dtype=jnp.float32)
    ys = jax.random.normal(ky, (9, 128), dtype=jnp.float32)
    loss_s = rmse_loss(xs, ys)
    jax.block_until_ready(loss_s)
    ref_s = jnp.sqrt(jnp.mean((xs.ravel() - ys.ravel()) ** 2))
    assert jnp.allclose(loss_s, ref_s, rtol=1e-5, atol=1e-6), (loss_s, ref_s)

    # Native-dtype check: bf16 stays bf16 through HBM; f32 cast happens in-kernel.
    xb = x.astype(jnp.bfloat16)
    yb = y.astype(jnp.bfloat16)
    loss_b = rmse_loss(xb, yb)
    jax.block_until_ready(loss_b)
    ref_b = jnp.sqrt(jnp.mean(
        (xb.astype(jnp.float32).ravel() - yb.astype(jnp.float32).ravel()) ** 2))
    assert jnp.allclose(loss_b, ref_b, rtol=1e-5, atol=1e-6), (loss_b, ref_b)

    print("KERNEL_OK")
</pallas_src>

<mosaic_0001>
module attributes {stable_mosaic.version = 11 : i64} {
  func.func @_rmse_partial_kernel(%arg0: i32, %arg1: i32, %arg2: memref<16x128xf32, #tpu.memory_space<vmem>>, %arg3: memref<16x128xf32, #tpu.memory_space<vmem>>, %arg4: memref<8x128xf32, #tpu.memory_space<vmem>>) attributes {dimension_semantics = [#tpu.dimension_semantics<parallel>, #tpu.dimension_semantics<arbitrary>], iteration_bounds = array<i64: 1, 1>, scalar_prefetch = 0 : i64, scratch_operands = 0 : i64, tpu.core_type = #tpu.core_type<tc>, window_params = [{transform_indices = @transform_0, window_bounds = array<i64: 16, 128>}, {transform_indices = @transform_1, window_bounds = array<i64: 16, 128>}, {transform_indices = @transform_2, window_bounds = array<i64: 8, 128>}]} {
    %c0_i32 = arith.constant 0 : i32
    %0 = arith.cmpi eq, %arg1, %c0_i32 : i32
    %1 = arith.extui %0 : i1 to i32
    %c0_i32_0 = arith.constant 0 : i32
    %2 = arith.cmpi ne, %1, %c0_i32_0 : i32
    scf.if %2 {
      %cst_8 = arith.constant 0.000000e+00 : f32
      %18 = vector.broadcast %cst_8 : f32 to vector<8x128xf32>
      %c0_9 = arith.constant 0 : index
      %c0_10 = arith.constant 0 : index
      %19 = vector.load %arg4[%c0_9, %c0_10] : memref<8x128xf32, #tpu.memory_space<vmem>>, vector<8x128xf32>
      tpu.vector_store %arg4[%c0_9, %c0_10], %18 {strides = array<i32>} : memref<8x128xf32, #tpu.memory_space<vmem>>, vector<8x128xf32>,
    } else {
    }
    %cst = arith.constant 0.000000e+00 : f32
    %3 = vector.broadcast %cst : f32 to vector<8x128xf32>
    %c0_i32_1 = arith.constant 0 : i32
    %c16_i32 = arith.constant 16 : i32
    %4 = arith.muli %c0_i32_1, %c16_i32 : i32
    %5 = tpu.assume_multiple %4, 16 : i32
    %6 = arith.index_cast %5 : i32 to index
    %c0 = arith.constant 0 : index
    %7 = vector.load %arg2[%6, %c0] : memref<16x128xf32, #tpu.memory_space<vmem>>, vector<16x128xf32>
    %8 = arith.index_cast %5 : i32 to index
    %c0_2 = arith.constant 0 : index
    %9 = vector.load %arg3[%8, %c0_2] : memref<16x128xf32, #tpu.memory_space<vmem>>, vector<16x128xf32>
    %10 = arith.subf %7, %9 : vector<16x128xf32>
    %11 = arith.mulf %10, %10 : vector<16x128xf32>
    %12 = vector.shape_cast %11 : vector<16x128xf32> to vector<2x8x128xf32>
    %cst_3 = arith.constant dense<0.000000e+00> : vector<8x128xf32>
    %13 = vector.multi_reduction <add>, %12, %cst_3 [0] : vector<2x8x128xf32> to vector<8x128xf32>
    %14 = arith.addf %3, %13 : vector<8x128xf32>
    %c1_i32 = arith.constant 1 : i32
    %c0_4 = arith.constant 0 : index
    %c0_5 = arith.constant 0 : index
    %15 = vector.load %arg4[%c0_4, %c0_5] : memref<8x128xf32, #tpu.memory_space<vmem>>, vector<8x128xf32>
    %16 = arith.addf %15, %14 : vector<8x128xf32>
    %c0_6 = arith.constant 0 : index
    %c0_7 = arith.constant 0 : index
    %17 = vector.load %arg4[%c0_6, %c0_7] : memref<8x128xf32, #tpu.memory_space<vmem>>, vector<8x128xf32>
    tpu.vector_store %arg4[%c0_6, %c0_7], %16 {strides = array<i32>} : memref<8x128xf32, #tpu.memory_space<vmem>>, vector<8x128xf32>,
    return
  }
  func.func @transform_0(%arg0: i32, %arg1: i32) -> (i32, i32) {
    %c1_i32 = arith.constant 1 : i32
    %0 = arith.muli %arg0, %c1_i32 : i32
    %1 = arith.addi %0, %arg1 : i32
    %c0_i32 = arith.constant 0 : i32
    %c0_i32_0 = arith.constant 0 : i32
    return %1, %c0_i32 : i32, i32
  }
  func.func @transform_1(%arg0: i32, %arg1: i32) -> (i32, i32) {
    %c1_i32 = arith.constant 1 : i32
    %0 = arith.muli %arg0, %c1_i32 : i32
    %1 = arith.addi %0, %arg1 : i32
    %c0_i32 = arith.constant 0 : i32
    %c0_i32_0 = arith.constant 0 : i32
    return %1, %c0_i32 : i32, i32
  }
  func.func @transform_2(%arg0: i32, %arg1: i32) -> (i32, i32) {
    %c0_i32 = arith.constant 0 : i32
    %c0_i32_0 = arith.constant 0 : i32
    return %arg0, %c0_i32 : i32, i32
  }
}

</mosaic_0001>

<llo_original>
// kernel: tpu_custom_call.1
$region0: #{tpu_custom_call.1}
  #allocation0 [shape = 'u32[]', space=smem, size = 0x4, offset = 0x4, fixed_abs, tag = 'smem constant byte address 0x4 - core index']
  #allocation1 [shape = 'u32[144,128]{1,0:T(1,128)}', space=vmem, size = 0x12000, scoped, tag = 'internal scratch']
  %s0 = inlined_call_operand.hbm [shape: f32[16,128], index: 0, kind: input, shape index: {}]
  %s1 = inlined_call_operand.hbm [shape: f32[16,128], index: 1, kind: input, shape index: {}]
  %s2 = inlined_call_operand.hbm [shape: f32[8,128], index: 2, kind: output, shape index: {}]
  %s3 = sld [smem:[#allocation0]]
  $region30: #{tpu_custom_call.1} parent=0
    _
  %s5 = ssub.s32 1, %s3
  %s6 = scalar_select 0, %s5, %s3
  $region1: #{tpu_custom_call.1} parent=0
    #allocation2 [shape = 'u8[8192]{0}', space=vmem, size = 0x2000, scoped, tag = 'input window, operand 0, single buffered']
    #allocation3 [shape = 's32[1]{0}', space=sflag, size = 0x4, scoped, tag = 'scoped memory for tpu_custom_call.1']
    #allocation4 [shape = 's32[1]{0}', space=sflag, size = 0x4, scoped, tag = 'scoped memory for tpu_custom_call.1']
    #allocation5 [shape = 'u8[8192]{0}', space=vmem, size = 0x2000, scoped, tag = 'input window, operand 1, single buffered']
    #allocation6 [shape = 's32[1]{0}', space=sflag, size = 0x4, scoped, tag = 'scoped memory for tpu_custom_call.1']
    #allocation7 [shape = 'u8[4096]{0}', space=vmem, size = 0x1000, scoped, tag = 'output window, operand 0, single buffered']
    %7 = vsyncpa [#allocation3], 0
    %8 = vsyncpa [#allocation6], 0
    %9 = vsyncpa [#allocation4], 0
    // Predicated region
    $region2: #{tpu_custom_call.1} parent=1 // pred_check
      _
    $region3: #{tpu_custom_call.1} parent=1 // pred_check_branch
      %11 = sbr.rel (0) target = $region5
    $region4: #{tpu_custom_call.1} parent=1 // pred_region
      %s12 = sadd.s32 0, 0
      %s13 = smul.u32 2, %s12
      %s15 = ssub.s32 256, 256
      %16 = vsyncadd [#allocation3], %s15
      %s17 = smul.addr %s13, 128
      %s18 = scalar_lea.hbm %s0, %s17
      %s19 = sshll.u32 [#allocation2], 4
      %s20 = int_to_ptr.vmem [resolvable:$true] %s19
      %25 = dma.hbm_to_vmem [thread:$0]  %s18, 256, %s20, [#allocation3], 128, 128, 8
    $region5: #{tpu_custom_call.1} parent=1 // pred_fallthru
      _
    // Predicated region
    $region6: #{tpu_custom_call.1} parent=1 // pred_check
      _
    $region7: #{tpu_custom_call.1} parent=1 // pred_check_branch
      %27 = sbr.rel (0) target = $region9
    $region8: #{tpu_custom_call.1} parent=1 // pred_region
      %s28 = sadd.s32 0, 0
      %s29 = smul.u32 2, %s28
      %s31 = ssub.s32 256, 256
      %32 = vsyncadd [#allocation6], %s31
      %s33 = smul.addr %s29, 128
      %s34 = scalar_lea.hbm %s1, %s33
      %s35 = sshll.u32 [#allocation5], 4
      %s36 = int_to_ptr.vmem [resolvable:$true] %s35
      %41 = dma.hbm_to_vmem [thread:$0]  %s34, 256, %s36, [#allocation6], 128, 128, 8
    $region9: #{tpu_custom_call.1} parent=1 // pred_fallthru
      _
    // Predicated region
    $region10: #{tpu_custom_call.1} parent=1 // pred_check
      _
    $region11: #{tpu_custom_call.1} parent=1 // pred_check_branch
      %43 = sbr.rel (0) target = $region13
    $region12: #{tpu_custom_call.1} parent=1 // pred_region
      %44 = dma.done [#allocation3], 256
    $region13: #{tpu_custom_call.1} parent=1 // pred_fallthru
      _
    // Predicated region
    $region14: #{tpu_custom_call.1} parent=1 // pred_check
      _
    $region15: #{tpu_custom_call.1} parent=1 // pred_check_branch
      %46 = sbr.rel (0) target = $region17
    $region16: #{tpu_custom_call.1} parent=1 // pred_region
      %47 = dma.done [#allocation6], 256
    $region17: #{tpu_custom_call.1} parent=1 // pred_fallthru
      _
    %s48 = sadd.s32 0, 0
    %s49 = smul.u32 2, %s48
    %s50 = sadd.s32 0, 0
    %s51 = smul.u32 2, %s50
    %p52 = scmp.eq.s32.totalorder 0, 0
    // Predicated region
    $region18: #{tpu_custom_call.1} parent=1 // pred_check
      %p53 = pneg %p52
    $region19: #{tpu_custom_call.1} parent=1 // pred_check_branch
      %55 = sbr.rel (%p53) target = $region21
    $region20: #{tpu_custom_call.1} parent=1 // pred_region
      %56 = vst [vmem:[#allocation7] sm:$0xff] 0.0
    $region21: #{tpu_custom_call.1} parent=1 // pred_fallthru
      _
    %v57 = vld [vmem:[#allocation2] sm:$0xff]
    %v58 = vld [vmem:[#allocation2 + $0x8] sm:$0xff]
    %v59 = vld [vmem:[#allocation5] sm:$0xff]
    %v60 = vld [vmem:[#allocation5 + $0x8] sm:$0xff]
    %v61 = vsub.f32 %v57, %v59
    %v62 = vsub.f32 %v58, %v60
    %v63 = vmul.f32 %v61, %v61
    %v64 = vmul.f32 %v62, %v62
    %v65 = vadd.f32 %v63, %v64
    %v66 = vadd.f32 %v65, 0.0
    %v67 = vld [vmem:[#allocation7] sm:$0xff]
    %v68 = vadd.f32 %v67, %v66
    %69 = vst [vmem:[#allocation7] sm:$0xff] %v68
    // Predicated region
    $region22: #{tpu_custom_call.1} parent=1 // pred_check
      _
    $region23: #{tpu_custom_call.1} parent=1 // pred_check_branch
      %71 = sbr.rel (0) target = $region25
    $region24: #{tpu_custom_call.1} parent=1 // pred_region
      %s73 = ssub.s32 128, 128
      %74 = vsyncadd [#allocation4], %s73
      %s76 = sshll.u32 [#allocation7], 4
      %s77 = int_to_ptr.vmem [resolvable:$true] %s76
      %79 = dma.vmem_to_hbm [thread:$0]  %s77, 128, %s2, [#allocation4]
    $region25: #{tpu_custom_call.1} parent=1 // pred_fallthru
      _
    // Predicated region
    $region26: #{tpu_custom_call.1} parent=1 // pred_check
      _
    $region27: #{tpu_custom_call.1} parent=1 // pred_check_branch
      %81 = sbr.rel (0) target = $region29
    $region28: #{tpu_custom_call.1} parent=1 // pred_region
      %82 = dma.done [#allocation4], 128
    $region29: #{tpu_custom_call.1} parent=1 // pred_fallthru
      _
    %83 = vsyncpa [#allocation3], 1
    %84 = vsyncpa [#allocation6], 1
    %85 = vsyncpa [#allocation4], 1

</llo_original>
